<compile_context>
chip_gen: v6e
topology: v6e:2x2x1
jax: 0.10.0
libtpu: 0.0.40
codegen_flags: <defaults>
</compile_context>

<pallas_src>
import functools

import jax
import jax.numpy as jnp
from jax.experimental import pallas as pl
from jax.experimental.pallas import tpu as pltpu


def _round_up(x, m):
    return ((x + m - 1) // m) * m


def make_mlp_kernel(h1_p, h2_p, h3_p, o_p):
    """Kernel closure over the (static) padded layer widths."""

    def mlp_kernel(x_ref, w1_ref, w2_ref, w3_ref, w4_ref, b_ref, out_ref):
        # x arrives f32; cast to bf16 so every dot runs the MXU at native
        # bf16 rate with f32 accumulation.
        x = x_ref[...].astype(jnp.bfloat16)

        # fc1 + ReLU   (bias add / ReLU stay in f32)
        h = jnp.dot(x, w1_ref[...], preferred_element_type=jnp.float32)
        h = jnp.maximum(h + b_ref[0:1, :h1_p], 0.0)
        # fc2 + ReLU
        h = jnp.dot(h.astype(jnp.bfloat16), w2_ref[...],
                    preferred_element_type=jnp.float32)
        h = jnp.maximum(h + b_ref[1:2, :h2_p], 0.0)
        # fc3 + ReLU
        h = jnp.dot(h.astype(jnp.bfloat16), w3_ref[...],
                    preferred_element_type=jnp.float32)
        h = jnp.maximum(h + b_ref[2:3, :h3_p], 0.0)
        # fc4 (no activation)
        y = jnp.dot(h.astype(jnp.bfloat16), w4_ref[...],
                    preferred_element_type=jnp.float32)
        out_ref[...] = (y + b_ref[3:4, :o_p]).astype(out_ref.dtype)

    return mlp_kernel


def pad_params(params):
    """Zero-pad weights/biases once, outside the per-call path.

    Input features: pad only to 8 sublanes. Hidden/output: pad to 128 lanes
    (lane-dense matmuls & unmasked stores). Weights cast to bf16; the four
    biases are concatenated into a single f32 (8, 128) block."""
    w1, w2, w3, w4 = params["w1"], params["w2"], params["w3"], params["w4"]
    b1, b2, b3, b4 = params["b1"], params["b2"], params["b3"], params["b4"]

    d_in = w1.shape[0]
    h1, h2, h3 = w1.shape[1], w2.shape[1], w3.shape[1]
    o = w4.shape[1]

    d_in_p = _round_up(d_in, 8)
    h1_p, h2_p, h3_p = (_round_up(d, 128) for d in (h1, h2, h3))
    o_p = _round_up(o, 128)
    bw = max(h1_p, h2_p, h3_p, o_p)

    def pad_w(w, rows_p, cols_p):
        w = jnp.pad(w, ((0, rows_p - w.shape[0]), (0, cols_p - w.shape[1])))
        return w.astype(jnp.bfloat16)

    def pad_b(b, cols_p):
        b = b.reshape(1, -1).astype(jnp.float32)
        return jnp.pad(b, ((0, 0), (0, cols_p - b.shape[1])))

    b_all = jnp.concatenate(
        [pad_b(b1, bw), pad_b(b2, bw), pad_b(b3, bw), pad_b(b4, bw),
         jnp.zeros((4, bw), jnp.float32)],  # pad to 8 sublanes
        axis=0,
    )

    padded = {
        "w1": pad_w(w1, d_in_p, h1_p),
        "w2": pad_w(w2, h1_p, h2_p),
        "w3": pad_w(w3, h2_p, h3_p),
        "w4": pad_w(w4, h3_p, o_p),
        "b_all": b_all,
    }
    dims = dict(d_in=d_in, d_in_p=d_in_p, h1_p=h1_p, h2_p=h2_p, h3_p=h3_p,
                o=o, o_p=o_p, bw=bw)
    return padded, dims


def _pick_batch_tile(B):
    """Batch tile heuristic:
      - small batch: one tile, rounded up to 8 sublanes;
      - large batch: big tiles (<=512 rows) to amortize the ~0.35 us per-step
        cost, but always >=2 grid steps so the 'parallel' axis can shard
        across both v7x TensorCores."""
    if B <= 128:
        return _round_up(max(B, 1), 8)
    return min(512, max(128, _round_up(pl.cdiv(B, 2), 128)))


def _network_forward(state, padded_params, dims):
    B, d_in = state.shape
    assert d_in == dims["d_in"]
    d_in_p, o_p = dims["d_in_p"], dims["o_p"]

    TB = _pick_batch_tile(B)
    B_p = _round_up(B, TB)
    grid = (B_p // TB,)

    x = jnp.pad(state, ((0, B_p - B), (0, d_in_p - d_in)))

    kernel = make_mlp_kernel(dims["h1_p"], dims["h2_p"], dims["h3_p"], o_p)

    def full_block(a):
        # Constant index map -> fetched once, resident across all batch tiles.
        return pl.BlockSpec(a.shape, lambda i: (0,) * a.ndim)

    out_padded = pl.pallas_call(
        kernel,
        out_shape=jax.ShapeDtypeStruct((B_p, o_p), jnp.float32),
        grid=grid,
        in_specs=[
            pl.BlockSpec((TB, d_in_p), lambda i: (i, 0)),   # x: tiled over batch
            full_block(padded_params["w1"]),
            full_block(padded_params["w2"]),
            full_block(padded_params["w3"]),
            full_block(padded_params["w4"]),
            full_block(padded_params["b_all"]),
        ],
        out_specs=pl.BlockSpec((TB, o_p), lambda i: (i, 0)),
        compiler_params=pltpu.CompilerParams(
            dimension_semantics=("parallel",),  # shard batch tiles across TCs
        ),
    )(x, padded_params["w1"], padded_params["w2"], padded_params["w3"],
      padded_params["w4"], padded_params["b_all"])

    return out_padded[:B, :dims["o"]]


def make_forward_fn(dims):
    """Jit once: the pad, pallas_call and output slice fuse into one program
    and are never re-traced per call (shapes permitting)."""

    @jax.jit
    def forward(state, padded_params):
        return _network_forward(state, padded_params, dims)

    return forward


def init_params(key, state_size, action_size,
                fc1_units=100, fc2_units=100, fc3_units=100):
    """Deterministic init mimicking PyTorch nn.Linear default:
    U(-1/sqrt(fan_in), 1/sqrt(fan_in)) for both weight and bias.
    Weights stored as [in, out]."""
    dims = [state_size, fc1_units, fc2_units, fc3_units, action_size]
    params = {}
    for i in range(4):
        fan_in, fan_out = dims[i], dims[i + 1]
        key, kw, kb = jax.random.split(key, 3)
        bound = 1.0 / jnp.sqrt(jnp.float32(fan_in))
        params[f"w{i+1}"] = jax.random.uniform(
            kw, (fan_in, fan_out), jnp.float32, -bound, bound
        )
        params[f"b{i+1}"] = jax.random.uniform(
            kb, (1, fan_out), jnp.float32, -bound, bound
        )
    return params


def reference_forward(state, params, dtype=jnp.float32):
    """Pure-JAX reference. dtype=bf16 mirrors the kernel's bf16-weight /
    f32-accumulate numerics; dtype=f32 matches the PyTorch module exactly."""

    def lin(x, w, b):
        return jnp.dot(x.astype(dtype), w.astype(dtype),
                       preferred_element_type=jnp.float32) + b

    h = jnp.maximum(lin(state, params["w1"], params["b1"]), 0.0)
    h = jnp.maximum(lin(h, params["w2"], params["b2"]), 0.0)
    h = jnp.maximum(lin(h, params["w3"], params["b3"]), 0.0)
    return lin(h, params["w4"], params["b4"])


if __name__ == "__main__":
    key = jax.random.PRNGKey(0)
    state_size, action_size = 16, 8
    batch = 4

    kp, kx, kx2 = jax.random.split(key, 3)
    params = init_params(kp, state_size, action_size)
    state = jax.random.normal(kx, (batch, state_size), jnp.float32)

    padded_params, pdims = pad_params(params)
    forward = make_forward_fn(pdims)

    # Small-batch path (single tile).
    out = jax.block_until_ready(forward(state, padded_params))
    assert out.shape == (batch, action_size)

    # Tight check vs a reference mirroring the kernel numerics
    # (bf16 operands, f32 accumulation).
    ref_bf16 = reference_forward(state, params, dtype=jnp.bfloat16)
    assert jnp.allclose(out, ref_bf16, atol=1e-3, rtol=1e-3)
    # Loose check vs the pure-f32 PyTorch-equivalent forward
    # (bf16 weight quantization => small deviation).
    ref_f32 = reference_forward(state, params, dtype=jnp.float32)
    assert jnp.allclose(out, ref_f32, atol=5e-2, rtol=5e-2)

    # Multi-tile / megacore-parallel path (grid > 1, 256-row tiles).
    big_state = jax.random.normal(kx2, (300, state_size), jnp.float32)
    big_out = jax.block_until_ready(forward(big_state, padded_params))
    big_ref = reference_forward(big_state, params, dtype=jnp.bfloat16)
    assert big_out.shape == (300, action_size)
    assert jnp.allclose(big_out, big_ref, atol=1e-3, rtol=1e-3)

    print("KERNEL_OK")
</pallas_src>

<mosaic_0001>
module attributes {stable_mosaic.version = 11 : i64} {
  func.func @mlp_kernel(%arg0: i32, %arg1: memref<8x16xf32, #tpu.memory_space<vmem>>, %arg2: memref<16x128xbf16, #tpu.memory_space<vmem>>, %arg3: memref<128x128xbf16, #tpu.memory_space<vmem>>, %arg4: memref<128x128xbf16, #tpu.memory_space<vmem>>, %arg5: memref<128x128xbf16, #tpu.memory_space<vmem>>, %arg6: memref<8x128xf32, #tpu.memory_space<vmem>>, %arg7: memref<8x128xf32, #tpu.memory_space<vmem>>) attributes {dimension_semantics = [#tpu.dimension_semantics<parallel>], iteration_bounds = array<i64: 1>, scalar_prefetch = 0 : i64, scratch_operands = 0 : i64, tpu.core_type = #tpu.core_type<tc>, window_params = [{transform_indices = @transform_0, window_bounds = array<i64: 8, 16>}, {pipeline_mode = #tpu.pipeline_mode<synchronous>, transform_indices = @transform_1, window_bounds = array<i64: 16, 128>}, {pipeline_mode = #tpu.pipeline_mode<synchronous>, transform_indices = @transform_2, window_bounds = array<i64: 128, 128>}, {pipeline_mode = #tpu.pipeline_mode<synchronous>, transform_indices = @transform_3, window_bounds = array<i64: 128, 128>}, {pipeline_mode = #tpu.pipeline_mode<synchronous>, transform_indices = @transform_4, window_bounds = array<i64: 128, 128>}, {pipeline_mode = #tpu.pipeline_mode<synchronous>, transform_indices = @transform_5, window_bounds = array<i64: 8, 128>}, {transform_indices = @transform_6, window_bounds = array<i64: 8, 128>}]} {
    %c0 = arith.constant 0 : index
    %c0_0 = arith.constant 0 : index
    %0 = vector.load %arg1[%c0, %c0_0] : memref<8x16xf32, #tpu.memory_space<vmem>>, vector<8x16xf32>
    %1 = arith.truncf %0 : vector<8x16xf32> to vector<8x16xbf16>
    %c0_1 = arith.constant 0 : index
    %c0_2 = arith.constant 0 : index
    %2 = vector.load %arg2[%c0_1, %c0_2] : memref<16x128xbf16, #tpu.memory_space<vmem>>, vector<16x128xbf16>
    %cst = arith.constant dense<0.000000e+00> : vector<8x128xf32>
    %3 = tpu.matmul %1, %2, %cst {dimension_numbers = #tpu.dot_dimension_numbers<[1], [0], [0], [1], [0, 0, 1, 1], [], []>} : vector<8x16xbf16>, vector<16x128xbf16>, vector<8x128xf32> -> vector<8x128xf32>
    %c0_3 = arith.constant 0 : index
    %c0_4 = arith.constant 0 : index
    %4 = vector.load %arg6[%c0_3, %c0_4] : memref<8x128xf32, #tpu.memory_space<vmem>>, vector<1x128xf32>
    %5 = vector.broadcast %4 : vector<1x128xf32> to vector<8x128xf32>
    %6 = arith.addf %3, %5 : vector<8x128xf32>
    %cst_5 = arith.constant 0.000000e+00 : f32
    %7 = vector.broadcast %cst_5 : f32 to vector<8x128xf32>
    %8 = arith.maximumf %6, %7 : vector<8x128xf32>
    %9 = arith.truncf %8 : vector<8x128xf32> to vector<8x128xbf16>
    %c0_6 = arith.constant 0 : index
    %c0_7 = arith.constant 0 : index
    %10 = vector.load %arg3[%c0_6, %c0_7] : memref<128x128xbf16, #tpu.memory_space<vmem>>, vector<128x128xbf16>
    %cst_8 = arith.constant dense<0.000000e+00> : vector<8x128xf32>
    %11 = tpu.matmul %9, %10, %cst_8 {dimension_numbers = #tpu.dot_dimension_numbers<[1], [0], [0], [1], [0, 0, 1, 1], [], []>} : vector<8x128xbf16>, vector<128x128xbf16>, vector<8x128xf32> -> vector<8x128xf32>
    %c1 = arith.constant 1 : index
    %c0_9 = arith.constant 0 : index
    %12 = vector.load %arg6[%c1, %c0_9] : memref<8x128xf32, #tpu.memory_space<vmem>>, vector<1x128xf32>
    %13 = vector.broadcast %12 : vector<1x128xf32> to vector<8x128xf32>
    %14 = arith.addf %11, %13 : vector<8x128xf32>
    %cst_10 = arith.constant 0.000000e+00 : f32
    %15 = vector.broadcast %cst_10 : f32 to vector<8x128xf32>
    %16 = arith.maximumf %14, %15 : vector<8x128xf32>
    %17 = arith.truncf %16 : vector<8x128xf32> to vector<8x128xbf16>
    %c0_11 = arith.constant 0 : index
    %c0_12 = arith.constant 0 : index
    %18 = vector.load %arg4[%c0_11, %c0_12] : memref<128x128xbf16, #tpu.memory_space<vmem>>, vector<128x128xbf16>
    %cst_13 = arith.constant dense<0.000000e+00> : vector<8x128xf32>
    %19 = tpu.matmul %17, %18, %cst_13 {dimension_numbers = #tpu.dot_dimension_numbers<[1], [0], [0], [1], [0, 0, 1, 1], [], []>} : vector<8x128xbf16>, vector<128x128xbf16>, vector<8x128xf32> -> vector<8x128xf32>
    %c2 = arith.constant 2 : index
    %c0_14 = arith.constant 0 : index
    %20 = vector.load %arg6[%c2, %c0_14] : memref<8x128xf32, #tpu.memory_space<vmem>>, vector<1x128xf32>
    %21 = vector.broadcast %20 : vector<1x128xf32> to vector<8x128xf32>
    %22 = arith.addf %19, %21 : vector<8x128xf32>
    %cst_15 = arith.constant 0.000000e+00 : f32
    %23 = vector.broadcast %cst_15 : f32 to vector<8x128xf32>
    %24 = arith.maximumf %22, %23 : vector<8x128xf32>
    %25 = arith.truncf %24 : vector<8x128xf32> to vector<8x128xbf16>
    %c0_16 = arith.constant 0 : index
    %c0_17 = arith.constant 0 : index
    %26 = vector.load %arg5[%c0_16, %c0_17] : memref<128x128xbf16, #tpu.memory_space<vmem>>, vector<128x128xbf16>
    %cst_18 = arith.constant dense<0.000000e+00> : vector<8x128xf32>
    %27 = tpu.matmul %25, %26, %cst_18 {dimension_numbers = #tpu.dot_dimension_numbers<[1], [0], [0], [1], [0, 0, 1, 1], [], []>} : vector<8x128xbf16>, vector<128x128xbf16>, vector<8x128xf32> -> vector<8x128xf32>
    %c3 = arith.constant 3 : index
    %c0_19 = arith.constant 0 : index
    %28 = vector.load %arg6[%c3, %c0_19] : memref<8x128xf32, #tpu.memory_space<vmem>>, vector<1x128xf32>
    %29 = vector.broadcast %28 : vector<1x128xf32> to vector<8x128xf32>
    %30 = arith.addf %27, %29 : vector<8x128xf32>
    %c0_20 = arith.constant 0 : index
    %c0_21 = arith.constant 0 : index
    %31 = vector.load %arg7[%c0_20, %c0_21] : memref<8x128xf32, #tpu.memory_space<vmem>>, vector<8x128xf32>
    tpu.vector_store %arg7[%c0_20, %c0_21], %30 {strides = array<i32>} : memref<8x128xf32, #tpu.memory_space<vmem>>, vector<8x128xf32>,
    return
  }
  func.func @transform_0(%arg0: i32) -> (i32, i32) {
    %c0_i32 = arith.constant 0 : i32
    %c0_i32_0 = arith.constant 0 : i32
    return %arg0, %c0_i32 : i32, i32
  }
  func.func @transform_1(%arg0: i32) -> (i32, i32) {
    %c0_i32 = arith.constant 0 : i32
    %c0_i32_0 = arith.constant 0 : i32
    %c0_i32_1 = arith.constant 0 : i32
    return %c0_i32, %c0_i32_0 : i32, i32
  }
  func.func @transform_2(%arg0: i32) -> (i32, i32) {
    %c0_i32 = arith.constant 0 : i32
    %c0_i32_0 = arith.constant 0 : i32
    %c0_i32_1 = arith.constant 0 : i32
    return %c0_i32, %c0_i32_0 : i32, i32
  }
  func.func @transform_3(%arg0: i32) -> (i32, i32) {
    %c0_i32 = arith.constant 0 : i32
    %c0_i32_0 = arith.constant 0 : i32
    %c0_i32_1 = arith.constant 0 : i32
    return %c0_i32, %c0_i32_0 : i32, i32
  }
  func.func @transform_4(%arg0: i32) -> (i32, i32) {
    %c0_i32 = arith.constant 0 : i32
    %c0_i32_0 = arith.constant 0 : i32
    %c0_i32_1 = arith.constant 0 : i32
    return %c0_i32, %c0_i32_0 : i32, i32
  }
  func.func @transform_5(%arg0: i32) -> (i32, i32) {
    %c0_i32 = arith.constant 0 : i32
    %c0_i32_0 = arith.constant 0 : i32
    %c0_i32_1 = arith.constant 0 : i32
    return %c0_i32, %c0_i32_0 : i32, i32
  }
  func.func @transform_6(%arg0: i32) -> (i32, i32) {
    %c0_i32 = arith.constant 0 : i32
    %c0_i32_0 = arith.constant 0 : i32
    return %arg0, %c0_i32 : i32, i32
  }
}

</mosaic_0001>

<llo_original>
// kernel: forward.1
$region0: #{forward.1}
  #allocation0 [shape = 'u32[]', space=smem, size = 0x4, offset = 0x4, fixed_abs, tag = 'smem constant byte address 0x4 - core index']
  #allocation1 [shape = 'u32[144,128]{1,0:T(1,128)}', space=vmem, size = 0x12000, scoped, tag = 'internal scratch']
  %s0 = inlined_call_operand.vmem [shape: f32[8,16], index: 0, kind: input, shape index: {}]
  %s1 = inlined_call_operand.vmem [shape: bf16[16,128], index: 1, kind: input, shape index: {}]
  %s2 = inlined_call_operand.hbm [shape: bf16[128,128], index: 2, kind: input, shape index: {}]
  %s3 = inlined_call_operand.hbm [shape: bf16[128,128], index: 3, kind: input, shape index: {}]
  %s4 = inlined_call_operand.hbm [shape: bf16[128,128], index: 4, kind: input, shape index: {}]
  %s5 = inlined_call_operand.vmem [shape: f32[8,128], index: 5, kind: input, shape index: {}]
  %s6 = inlined_call_operand.vmem [shape: f32[8,128], index: 6, kind: output, shape index: {}]
  %s7 = sld [smem:[#allocation0]]
  $region46: #{forward.1} parent=0
    _
  %s9 = ssub.s32 1, %s7
  %s10 = scalar_select 0, %s9, %s7
  $region1: #{forward.1} parent=0
    #allocation2 [shape = 'u8[32768]{0}', space=vmem, size = 0x8000, scoped, tag = 'input window, operand 2, single buffered']
    #allocation3 [shape = 's32[1]{0}', space=sflag, size = 0x4, scoped, tag = 'scoped memory for forward.1']
    #allocation4 [shape = 'u8[32768]{0}', space=vmem, size = 0x8000, scoped, tag = 'input window, operand 3, single buffered']
    #allocation5 [shape = 's32[1]{0}', space=sflag, size = 0x4, scoped, tag = 'scoped memory for forward.1']
    #allocation6 [shape = 'u8[32768]{0}', space=vmem, size = 0x8000, scoped, tag = 'input window, operand 4, single buffered']
    %11 = vsyncpa [#allocation3], 0
    %12 = vsyncpa [#allocation5], 0
    // Predicated region
    $region2: #{forward.1} parent=1 // pred_check
      _
    $region3: #{forward.1} parent=1 // pred_check_branch
      %14 = sbr.rel (0) target = $region5
    $region4: #{forward.1} parent=1 // pred_region
      _
    $region5: #{forward.1} parent=1 // pred_fallthru
      _
    // Predicated region
    $region6: #{forward.1} parent=1 // pred_check
      _
    $region7: #{forward.1} parent=1 // pred_check_branch
      %16 = sbr.rel (0) target = $region9
    $region8: #{forward.1} parent=1 // pred_region
      _
    $region9: #{forward.1} parent=1 // pred_fallthru
      _
    // Predicated region
    $region10: #{forward.1} parent=1 // pred_check
      _
    $region11: #{forward.1} parent=1 // pred_check_branch
      %18 = sbr.rel (0) target = $region13
    $region12: #{forward.1} parent=1 // pred_region
      %s20 = ssub.s32 1024, 1024
      %21 = vsyncadd [#allocation3], %s20
      %s22 = sshll.u32 [#allocation2], 4
      %s23 = int_to_ptr.vmem [resolvable:$true] %s22
      %28 = dma.hbm_to_vmem [thread:$0]  %s2, 1024, %s23, [#allocation3], 64, 64, 4
    $region13: #{forward.1} parent=1 // pred_fallthru
      _
    // Predicated region
    $region14: #{forward.1} parent=1 // pred_check
      _
    $region15: #{forward.1} parent=1 // pred_check_branch
      %30 = sbr.rel (0) target = $region17
    $region16: #{forward.1} parent=1 // pred_region
      %s32 = ssub.s32 1024, 1024
      %33 = vsyncadd [#allocation5], %s32
      %s34 = sshll.u32 [#allocation4], 4
      %s35 = int_to_ptr.vmem [resolvable:$true] %s34
      %40 = dma.hbm_to_vmem [thread:$0]  %s3, 1024, %s35, [#allocation5], 64, 64, 4
    $region17: #{forward.1} parent=1 // pred_fallthru
      _
    // Predicated region
    $region18: #{forward.1} parent=1 // pred_check
      _
    $region19: #{forward.1} parent=1 // pred_check_branch
      %42 = sbr.rel (0) target = $region21
    $region20: #{forward.1} parent=1 // pred_region
      %s44 = ssub.s32 1024, 1024
      %45 = vsyncadd [#allocation5], %s44
      %s46 = sshll.u32 [#allocation6], 4
      %s47 = int_to_ptr.vmem [resolvable:$true] %s46
      %52 = dma.hbm_to_vmem [thread:$0]  %s4, 1024, %s47, [#allocation5], 64, 64, 4
    $region21: #{forward.1} parent=1 // pred_fallthru
      _
    // Predicated region
    $region22: #{forward.1} parent=1 // pred_check
      _
    $region23: #{forward.1} parent=1 // pred_check_branch
      %54 = sbr.rel (0) target = $region25
    $region24: #{forward.1} parent=1 // pred_region
      _
    $region25: #{forward.1} parent=1 // pred_fallthru
      _
    // Predicated region
    $region26: #{forward.1} parent=1 // pred_check
      _
    $region27: #{forward.1} parent=1 // pred_check_branch
      %56 = sbr.rel (0) target = $region29
    $region28: #{forward.1} parent=1 // pred_region
      %57 = dma.done [#allocation3], 1024
    $region29: #{forward.1} parent=1 // pred_fallthru
      _
    // Predicated region
    $region30: #{forward.1} parent=1 // pred_check
      _
    $region31: #{forward.1} parent=1 // pred_check_branch
      %59 = sbr.rel (0) target = $region33
    $region32: #{forward.1} parent=1 // pred_region
      %60 = dma.done [#allocation5], 1024
    $region33: #{forward.1} parent=1 // pred_fallthru
      _
    // Predicated region
    $region34: #{forward.1} parent=1 // pred_check
      _
    $region35: #{forward.1} parent=1 // pred_check_branch
      %62 = sbr.rel (0) target = $region37
    $region36: #{forward.1} parent=1 // pred_region
      %63 = dma.done [#allocation5], 1024
    $region37: #{forward.1} parent=1 // pred_fallthru
      _
    %v65 = vld [vmem:[%s0] sm:$0xff]
    %v66 = vpack.c.bf16 %v65, %v65
    %v67 = vld [vmem:[%s1] sm:$0xf]
    %v68 = vld [vmem:[%s1 + $0x4] sm:$0xf]
    %v69 = vld [vmem:[%s5] sm:$0x1]
    %v70 = vlaneseq
    %v71 = vshrl.u32 %v70, 7
    %v72 = vsub.s32 0, %v71
    %v73 = vrot.slane %v69, %v72
    %v76 = vunpack.c.l.b16 %v67
    %v77 = vunpack.c.l.b16 %v68
    %v78 = vpack.c.b16 %v77, %v76
    %vm80 = vcmask 130048
    %v82 = vsel %vm80, %v66, 0
    %84 = vmatprep.subr.bf16.mxu0 0
    %85 = vmatpush1.bf16.msra.mxu0 0
    %86 = vmatprep.subr.bf16.mxu0 0
    %87 = vmatpush1.bf16.msra.mxu0 0
    %88 = vmatprep.subr.bf16.mxu0 0
    %89 = vmatpush1.bf16.msra.mxu0 0
    %90 = vmatprep.subr.bf16.mxu0 0
    %91 = vmatpush1.bf16.msra.mxu0 0
    %92 = vmatprep.subr.bf16.mxu0 0
    %93 = vmatpush1.bf16.msra.mxu0 0
    %94 = vmatprep.subr.bf16.mxu0 0
    %95 = vmatpush1.bf16.msra.mxu0 0
    %96 = vmatprep.subr.bf16.mxu0 0
    %97 = vmatpush1.bf16.msra.mxu0 0
    %98 = vmatprep.subr.bf16.mxu0 0
    %99 = vmatpush1.bf16.msra.mxu0 %v78
    %100 = vmatprep.subr.bf16.mxu0 0
    %101 = vmatpush2.bf16.msra.mxu0 0
    %102 = vmatprep.subr.bf16.mxu0 0
    %103 = vmatpush2.bf16.msra.mxu0 0
    %104 = vmatprep.subr.bf16.mxu0 0
    %105 = vmatpush2.bf16.msra.mxu0 0
    %106 = vmatprep.subr.bf16.mxu0 0
    %107 = vmatpush2.bf16.msra.mxu0 0
    %108 = vmatprep.subr.bf16.mxu0 0
    %109 = vmatpush2.bf16.msra.mxu0 0
    %110 = vmatprep.subr.bf16.mxu0 0
    %111 = vmatpush2.bf16.msra.mxu0 0
    %112 = vmatprep.subr.bf16.mxu0 0
    %113 = vmatpush2.bf16.msra.mxu0 0
    %114 = vmatprep.subr.bf16.mxu0 0
    %115 = vmatpush2.bf16.msra.mxu0 0
    %116 = vmatprep.mubr.bf16.mxu0 0
    %117 = vmatmul.mubr.bf16.gmra.mxu0 %v82
    %v118 = vpop.f32.mrf.mxu0
    %v119 = vadd.f32 %v73, %v118
    %v120 = vpop.f32.mrf.mxu0
    %v121 = vpop.f32.mrf.mxu0
    %v122 = vpop.f32.mrf.mxu0
    %123 = vdwg.mxu0
    %v124 = vmax.f32 %v119, 0.0
    %v125 = vpack.c.bf16 %v124, %v124
    %v126 = vld [vmem:[#allocation2] sm:$0xf]
    %v127 = vld [vmem:[#allocation2 + $0x4] sm:$0xf]
    %v128 = vld [vmem:[#allocation2 + $0x8] sm:$0xf]
    %v129 = vld [vmem:[#allocation2 + $0xc] sm:$0xf]
    %v130 = vld [vmem:[#allocation2 + $0x10] sm:$0xf]
    %v131 = vld [vmem:[#allocation2 + $0x14] sm:$0xf]
    %v132 = vld [vmem:[#allocation2 + $0x18] sm:$0xf]
    %v133 = vld [vmem:[#allocation2 + $0x1c] sm:$0xf]
    %v134 = vld [vmem:[#allocation2 + $0x20] sm:$0xf]
    %v135 = vld [vmem:[#allocation2 + $0x24] sm:$0xf]
    %v136 = vld [vmem:[#allocation2 + $0x28] sm:$0xf]
    %v137 = vld [vmem:[#allocation2 + $0x2c] sm:$0xf]
    %v138 = vld [vmem:[#allocation2 + $0x30] sm:$0xf]
    %v139 = vld [vmem:[#allocation2 + $0x34] sm:$0xf]
    %v140 = vld [vmem:[#allocation2 + $0x38] sm:$0xf]
    %v141 = vld [vmem:[#allocation2 + $0x3c] sm:$0xf]
    %v142 = vld [vmem:[%s5 + $0x1] sm:$0x1]
    %v143 = vlaneseq
    %v144 = vshrl.u32 %v143, 7
    %v145 = vsub.s32 0, %v144
    %v146 = vrot.slane %v142, %v145
    %v163 = vunpack.c.l.b16 %v126
    %v164 = vunpack.c.l.b16 %v127
    %v165 = vunpack.c.l.b16 %v128
    %v166 = vunpack.c.l.b16 %v129
    %v167 = vunpack.c.l.b16 %v130
    %v168 = vunpack.c.l.b16 %v131
    %v169 = vunpack.c.l.b16 %v132
    %v170 = vunpack.c.l.b16 %v133
    %v171 = vunpack.c.l.b16 %v134
    %v172 = vunpack.c.l.b16 %v135
    %v173 = vunpack.c.l.b16 %v136
    %v174 = vunpack.c.l.b16 %v137
    %v175 = vunpack.c.l.b16 %v138
    %v176 = vunpack.c.l.b16 %v139
    %v177 = vunpack.c.l.b16 %v140
    %v178 = vunpack.c.l.b16 %v141
    %v179 = vpack.c.b16 %v164, %v163
    %v180 = vpack.c.b16 %v166, %v165
    %v181 = vpack.c.b16 %v168, %v167
    %v182 = vpack.c.b16 %v170, %v169
    %v183 = vpack.c.b16 %v172, %v171
    %v184 = vpack.c.b16 %v174, %v173
    %v185 = vpack.c.b16 %v176, %v175
    %v186 = vpack.c.b16 %v178, %v177
    %195 = vmatprep.subr.bf16.mxu0 0
    %196 = vmatpush1.bf16.msra.mxu0 %v186
    %197 = vmatprep.subr.bf16.mxu0 0
    %198 = vmatpush1.bf16.msra.mxu0 %v185
    %199 = vmatprep.subr.bf16.mxu0 0
    %200 = vmatpush1.bf16.msra.mxu0 %v184
    %201 = vmatprep.subr.bf16.mxu0 0
    %202 = vmatpush1.bf16.msra.mxu0 %v183
    %203 = vmatprep.subr.bf16.mxu0 0
    %204 = vmatpush1.bf16.msra.mxu0 %v182
    %205 = vmatprep.subr.bf16.mxu0 0
    %206 = vmatpush1.bf16.msra.mxu0 %v181
    %207 = vmatprep.subr.bf16.mxu0 0
    %208 = vmatpush1.bf16.msra.mxu0 %v180
    %209 = vmatprep.subr.bf16.mxu0 0
    %210 = vmatpush1.bf16.msra.mxu0 %v179
    %211 = vmatprep.subr.bf16.mxu0 0
    %212 = vmatpush2.bf16.msra.mxu0 0
    %213 = vmatprep.subr.bf16.mxu0 0
    %214 = vmatpush2.bf16.msra.mxu0 0
    %215 = vmatprep.subr.bf16.mxu0 0
    %216 = vmatpush2.bf16.msra.mxu0 0
    %217 = vmatprep.subr.bf16.mxu0 0
    %218 = vmatpush2.bf16.msra.mxu0 0
    %219 = vmatprep.subr.bf16.mxu0 0
    %220 = vmatpush2.bf16.msra.mxu0 0
    %221 = vmatprep.subr.bf16.mxu0 0
    %222 = vmatpush2.bf16.msra.mxu0 0
    %223 = vmatprep.subr.bf16.mxu0 0
    %224 = vmatpush2.bf16.msra.mxu0 0
    %225 = vmatprep.subr.bf16.mxu0 0
    %226 = vmatpush2.bf16.msra.mxu0 0
    %227 = vmatprep.mubr.bf16.mxu0 0
    %228 = vmatmul.mubr.bf16.gmra.mxu0 %v125
    %v229 = vpop.f32.mrf.mxu0
    %v230 = vadd.f32 %v146, %v229
    %v231 = vpop.f32.mrf.mxu0
    %v232 = vpop.f32.mrf.mxu0
    %v233 = vpop.f32.mrf.mxu0
    %234 = vdwg.mxu0
    %v235 = vmax.f32 %v230, 0.0
    %v236 = vpack.c.bf16 %v235, %v235
    %v237 = vld [vmem:[#allocation4] sm:$0xf]
    %v238 = vld [vmem:[#allocation4 + $0x4] sm:$0xf]
    %v239 = vld [vmem:[#allocation4 + $0x8] sm:$0xf]
    %v240 = vld [vmem:[#allocation4 + $0xc] sm:$0xf]
    %v241 = vld [vmem:[#allocation4 + $0x10] sm:$0xf]
    %v242 = vld [vmem:[#allocation4 + $0x14] sm:$0xf]
    %v243 = vld [vmem:[#allocation4 + $0x18] sm:$0xf]
    %v244 = vld [vmem:[#allocation4 + $0x1c] sm:$0xf]
    %v245 = vld [vmem:[#allocation4 + $0x20] sm:$0xf]
    %v246 = vld [vmem:[#allocation4 + $0x24] sm:$0xf]
    %v247 = vld [vmem:[#allocation4 + $0x28] sm:$0xf]
    %v248 = vld [vmem:[#allocation4 + $0x2c] sm:$0xf]
    %v249 = vld [vmem:[#allocation4 + $0x30] sm:$0xf]
    %v250 = vld [vmem:[#allocation4 + $0x34] sm:$0xf]
    %v251 = vld [vmem:[#allocation4 + $0x38] sm:$0xf]
    %v252 = vld [vmem:[#allocation4 + $0x3c] sm:$0xf]
    %v253 = vld [vmem:[%s5 + $0x2] sm:$0x1]
    %v254 = vlaneseq
    %v255 = vshrl.u32 %v254, 7
    %v256 = vsub.s32 0, %v255
    %v257 = vrot.slane %v253, %v256
    %v274 = vunpack.c.l.b16 %v237
    %v275 = vunpack.c.l.b16 %v238
    %v276 = vunpack.c.l.b16 %v239
    %v277 = vunpack.c.l.b16 %v240
    %v278 = vunpack.c.l.b16 %v241
    %v279 = vunpack.c.l.b16 %v242
    %v280 = vunpack.c.l.b16 %v243
    %v281 = vunpack.c.l.b16 %v244
    %v282 = vunpack.c.l.b16 %v245
    %v283 = vunpack.c.l.b16 %v246
    %v284 = vunpack.c.l.b16 %v247
    %v285 = vunpack.c.l.b16 %v248
    %v286 = vunpack.c.l.b16 %v249
    %v287 = vunpack.c.l.b16 %v250
    %v288 = vunpack.c.l.b16 %v251
    %v289 = vunpack.c.l.b16 %v252
    %v290 = vpack.c.b16 %v275, %v274
    %v291 = vpack.c.b16 %v277, %v276
    %v292 = vpack.c.b16 %v279, %v278
    %v293 = vpack.c.b16 %v281, %v280
    %v294 = vpack.c.b16 %v283, %v282
    %v295 = vpack.c.b16 %v285, %v284
    %v296 = vpack.c.b16 %v287, %v286
    %v297 = vpack.c.b16 %v289, %v288
    %306 = vmatprep.subr.bf16.mxu0 0
    %307 = vmatpush1.bf16.msra.mxu0 %v297
    %308 = vmatprep.subr.bf16.mxu0 0
    %309 = vmatpush1.bf16.msra.mxu0 %v296
    %310 = vmatprep.subr.bf16.mxu0 0
    %311 = vmatpush1.bf16.msra.mxu0 %v295
    %312 = vmatprep.subr.bf16.mxu0 0
    %313 = vmatpush1.bf16.msra.mxu0 %v294
    %314 = vmatprep.subr.bf16.mxu0 0
    %315 = vmatpush1.bf16.msra.mxu0 %v293
    %316 = vmatprep.subr.bf16.mxu0 0
    %317 = vmatpush1.bf16.msra.mxu0 %v292
    %318 = vmatprep.subr.bf16.mxu0 0
    %319 = vmatpush1.bf16.msra.mxu0 %v291
    %320 = vmatprep.subr.bf16.mxu0 0
    %321 = vmatpush1.bf16.msra.mxu0 %v290
    %322 = vmatprep.subr.bf16.mxu0 0
    %323 = vmatpush2.bf16.msra.mxu0 0
    %324 = vmatprep.subr.bf16.mxu0 0
    %325 = vmatpush2.bf16.msra.mxu0 0
    %326 = vmatprep.subr.bf16.mxu0 0
    %327 = vmatpush2.bf16.msra.mxu0 0
    %328 = vmatprep.subr.bf16.mxu0 0
    %329 = vmatpush2.bf16.msra.mxu0 0
    %330 = vmatprep.subr.bf16.mxu0 0
    %331 = vmatpush2.bf16.msra.mxu0 0
    %332 = vmatprep.subr.bf16.mxu0 0
    %333 = vmatpush2.bf16.msra.mxu0 0
    %334 = vmatprep.subr.bf16.mxu0 0
    %335 = vmatpush2.bf16.msra.mxu0 0
    %336 = vmatprep.subr.bf16.mxu0 0
    %337 = vmatpush2.bf16.msra.mxu0 0
    %338 = vmatprep.mubr.bf16.mxu0 0
    %339 = vmatmul.mubr.bf16.gmra.mxu0 %v236
    %v340 = vpop.f32.mrf.mxu0
    %v341 = vadd.f32 %v257, %v340
    %v342 = vpop.f32.mrf.mxu0
    %v343 = vpop.f32.mrf.mxu0
    %v344 = vpop.f32.mrf.mxu0
    %345 = vdwg.mxu0
    %v346 = vmax.f32 %v341, 0.0
    %v347 = vpack.c.bf16 %v346, %v346
    %v348 = vld [vmem:[#allocation6] sm:$0xf]
    %v349 = vld [vmem:[#allocation6 + $0x4] sm:$0xf]
    %v350 = vld [vmem:[#allocation6 + $0x8] sm:$0xf]
    %v351 = vld [vmem:[#allocation6 + $0xc] sm:$0xf]
    %v352 = vld [vmem:[#allocation6 + $0x10] sm:$0xf]
    %v353 = vld [vmem:[#allocation6 + $0x14] sm:$0xf]
    %v354 = vld [vmem:[#allocation6 + $0x18] sm:$0xf]
    %v355 = vld [vmem:[#allocation6 + $0x1c] sm:$0xf]
    %v356 = vld [vmem:[#allocation6 + $0x20] sm:$0xf]
    %v357 = vld [vmem:[#allocation6 + $0x24] sm:$0xf]
    %v358 = vld [vmem:[#allocation6 + $0x28] sm:$0xf]
    %v359 = vld [vmem:[#allocation6 + $0x2c] sm:$0xf]
    %v360 = vld [vmem:[#allocation6 + $0x30] sm:$0xf]
    %v361 = vld [vmem:[#allocation6 + $0x34] sm:$0xf]
    %v362 = vld [vmem:[#allocation6 + $0x38] sm:$0xf]
    %v363 = vld [vmem:[#allocation6 + $0x3c] sm:$0xf]
    %v364 = vld [vmem:[%s5 + $0x3] sm:$0x1]
    %v365 = vlaneseq
    %v366 = vshrl.u32 %v365, 7
    %v367 = vsub.s32 0, %v366
    %v368 = vrot.slane %v364, %v367
    %v385 = vunpack.c.l.b16 %v348
    %v386 = vunpack.c.l.b16 %v349
    %v387 = vunpack.c.l.b16 %v350
    %v388 = vunpack.c.l.b16 %v351
    %v389 = vunpack.c.l.b16 %v352
    %v390 = vunpack.c.l.b16 %v353
    %v391 = vunpack.c.l.b16 %v354
    %v392 = vunpack.c.l.b16 %v355
    %v393 = vunpack.c.l.b16 %v356
    %v394 = vunpack.c.l.b16 %v357
    %v395 = vunpack.c.l.b16 %v358
    %v396 = vunpack.c.l.b16 %v359
    %v397 = vunpack.c.l.b16 %v360
    %v398 = vunpack.c.l.b16 %v361
    %v399 = vunpack.c.l.b16 %v362
    %v400 = vunpack.c.l.b16 %v363
    %v401 = vpack.c.b16 %v386, %v385
    %v402 = vpack.c.b16 %v388, %v387
    %v403 = vpack.c.b16 %v390, %v389
    %v404 = vpack.c.b16 %v392, %v391
    %v405 = vpack.c.b16 %v394, %v393
    %v406 = vpack.c.b16 %v396, %v395
    %v407 = vpack.c.b16 %v398, %v397
    %v408 = vpack.c.b16 %v400, %v399
    %417 = vmatprep.subr.bf16.mxu0 0
    %418 = vmatpush1.bf16.msra.mxu0 %v408
    %419 = vmatprep.subr.bf16.mxu0 0
    %420 = vmatpush1.bf16.msra.mxu0 %v407
    %421 = vmatprep.subr.bf16.mxu0 0
    %422 = vmatpush1.bf16.msra.mxu0 %v406
    %423 = vmatprep.subr.bf16.mxu0 0
    %424 = vmatpush1.bf16.msra.mxu0 %v405
    %425 = vmatprep.subr.bf16.mxu0 0
    %426 = vmatpush1.bf16.msra.mxu0 %v404
    %427 = vmatprep.subr.bf16.mxu0 0
    %428 = vmatpush1.bf16.msra.mxu0 %v403
    %429 = vmatprep.subr.bf16.mxu0 0
    %430 = vmatpush1.bf16.msra.mxu0 %v402
    %431 = vmatprep.subr.bf16.mxu0 0
    %432 = vmatpush1.bf16.msra.mxu0 %v401
    %433 = vmatprep.subr.bf16.mxu0 0
    %434 = vmatpush2.bf16.msra.mxu0 0
    %435 = vmatprep.subr.bf16.mxu0 0
    %436 = vmatpush2.bf16.msra.mxu0 0
    %437 = vmatprep.subr.bf16.mxu0 0
    %438 = vmatpush2.bf16.msra.mxu0 0
    %439 = vmatprep.subr.bf16.mxu0 0
    %440 = vmatpush2.bf16.msra.mxu0 0
    %441 = vmatprep.subr.bf16.mxu0 0
    %442 = vmatpush2.bf16.msra.mxu0 0
    %443 = vmatprep.subr.bf16.mxu0 0
    %444 = vmatpush2.bf16.msra.mxu0 0
    %445 = vmatprep.subr.bf16.mxu0 0
    %446 = vmatpush2.bf16.msra.mxu0 0
    %447 = vmatprep.subr.bf16.mxu0 0
    %448 = vmatpush2.bf16.msra.mxu0 0
    %449 = vmatprep.mubr.bf16.mxu0 0
    %450 = vmatmul.mubr.bf16.gmra.mxu0 %v347
    %v451 = vpop.f32.mrf.mxu0
    %v452 = vadd.f32 %v368, %v451
    %v453 = vpop.f32.mrf.mxu0
    %v454 = vpop.f32.mrf.mxu0
    %v455 = vpop.f32.mrf.mxu0
    %456 = vdwg.mxu0
    %457 = vst [vmem:[%s6] sm:$0xff] %v452
    // Predicated region
    $region38: #{forward.1} parent=1 // pred_check
      _
    $region39: #{forward.1} parent=1 // pred_check_branch
      %459 = sbr.rel (0) target = $region41
    $region40: #{forward.1} parent=1 // pred_region
      _
    $region41: #{forward.1} parent=1 // pred_fallthru
      _
    // Predicated region
    $region42: #{forward.1} parent=1 // pred_check
      _
    $region43: #{forward.1} parent=1 // pred_check_branch
      %461 = sbr.rel (0) target = $region45
    $region44: #{forward.1} parent=1 // pred_region
      _
    $region45: #{forward.1} parent=1 // pred_fallthru
      _
    %462 = vsyncpa [#allocation3], 1
    %463 = vsyncpa [#allocation5], 1

</llo_original>
